<compile_context>
chip_gen: v6e
topology: v6e:2x2x1
jax: 0.10.0
libtpu: 0.0.40
codegen_flags: <defaults>
</compile_context>

<pallas_src>
import jax
import jax.numpy as jnp
from jax.experimental import pallas as pl
from jax.experimental.pallas import tpu as pltpu

IN_FEATURES = 23
OUT_FEATURES = 23


def _linear_kernel(x_ref, w_ref, b_ref, o_ref):
    # x_ref: [B, IN], w_ref: [IN, OUT] (pre-transposed), b_ref: [1, OUT]
    acc = jnp.dot(x_ref[...], w_ref[...], preferred_element_type=jnp.float32)
    o_ref[...] = acc + b_ref[...]  # bias broadcasts over the batch (sublane) axis


def _linear_pallas(x, w_t, b_row):
    """x: [B, IN] f32, w_t: [IN, OUT] f32, b_row: [1, OUT] f32 -> [B, OUT] f32."""
    batch = x.shape[0]
    return pl.pallas_call(
        _linear_kernel,
        out_shape=jax.ShapeDtypeStruct((batch, OUT_FEATURES), jnp.float32),
        in_specs=[
            pl.BlockSpec(memory_space=pltpu.MemorySpace.VMEM),
            pl.BlockSpec(memory_space=pltpu.MemorySpace.VMEM),
            pl.BlockSpec(memory_space=pltpu.MemorySpace.VMEM),
        ],
        out_specs=pl.BlockSpec(memory_space=pltpu.MemorySpace.VMEM),
    )(x, w_t, b_row)


_linear_pallas_jit = jax.jit(_linear_pallas)


class RegressionModelPallas:
    """Mirror of the PyTorch RegressionModel: a single Linear(23, 23)."""

    def __init__(self, weight, bias):
        # Hoisted out of the per-call path: weight transposed to [in, out]
        # (matching y = x @ W.T + b) and bias reshaped to a [1, out] row.
        self.w_t = jnp.asarray(weight, jnp.float32).T          # [IN, OUT]
        self.b_row = jnp.asarray(bias, jnp.float32)[None, :]   # [1, OUT]

    def __call__(self, x):
        return _linear_pallas_jit(x, self.w_t, self.b_row)


if __name__ == "__main__":
    # Deterministic parameter init (mimics nn.Linear's U(-1/sqrt(in), 1/sqrt(in))).
    key = jax.random.PRNGKey(0)
    k_w, k_b = jax.random.split(key)
    bound = 1.0 / jnp.sqrt(float(IN_FEATURES))
    weight = jax.random.uniform(
        k_w, (OUT_FEATURES, IN_FEATURES), jnp.float32, -bound, bound
    )
    bias = jax.random.uniform(k_b, (OUT_FEATURES,), jnp.float32, -bound, bound)

    model = RegressionModelPallas(weight, bias)

    # The 23-element vector from the original script; stacked into a small
    # batch (row 0 is the original input) so the launch cost is amortized.
    x_vals = jnp.array(
        [12.4, 14.3, 14.5, 14.9, 16.1, 16.9, 16.5, 15.4, 17.0, 17.9, 18.8,
         20.3, 22.4, 19.4, 15.5, 16.7, 17.3, 18.4, 19.2, 17.4, 19.5, 19.7,
         21.2],
        dtype=jnp.float32,
    )
    B = 8
    x = x_vals[None, :] + 0.1 * jnp.arange(B, dtype=jnp.float32)[:, None]  # [8, 23]

    y = model(x)
    y = jax.block_until_ready(y)

    # Reference check against plain-JAX Linear semantics (y = x @ W.T + b).
    y_ref = x @ weight.T + bias
    assert y.shape == (B, OUT_FEATURES)
    assert jnp.allclose(y, y_ref, atol=1e-4, rtol=1e-4)
    # Row 0 reproduces the original batch-1 forward of the PyTorch script.
    assert jnp.allclose(
        y[0], (x_vals[None, :] @ weight.T + bias)[0], atol=1e-4, rtol=1e-4
    )

    print("KERNEL_OK")
</pallas_src>

<mosaic_0001>
module attributes {stable_mosaic.version = 11 : i64} {
  func.func @_linear_kernel(%arg0: memref<8x23xf32, #tpu.memory_space<vmem>>, %arg1: memref<23x23xf32, #tpu.memory_space<vmem>>, %arg2: memref<1x23xf32, #tpu.memory_space<vmem>>, %arg3: memref<8x23xf32, #tpu.memory_space<vmem>>) attributes {dimension_semantics = [], scalar_prefetch = 0 : i64, scratch_operands = 0 : i64, tpu.core_type = #tpu.core_type<tc>} {
    %c0 = arith.constant 0 : index
    %c0_0 = arith.constant 0 : index
    %0 = vector.load %arg0[%c0, %c0_0] : memref<8x23xf32, #tpu.memory_space<vmem>>, vector<8x23xf32>
    %c0_1 = arith.constant 0 : index
    %c0_2 = arith.constant 0 : index
    %1 = vector.load %arg1[%c0_1, %c0_2] : memref<23x23xf32, #tpu.memory_space<vmem>>, vector<23x23xf32>
    %cst = arith.constant dense<0.000000e+00> : vector<8x23xf32>
    %2 = tpu.matmul %0, %1, %cst {dimension_numbers = #tpu.dot_dimension_numbers<[1], [0], [0], [1], [0, 0, 1, 1], [], []>} : vector<8x23xf32>, vector<23x23xf32>, vector<8x23xf32> -> vector<8x23xf32>
    %c0_3 = arith.constant 0 : index
    %c0_4 = arith.constant 0 : index
    %3 = vector.load %arg2[%c0_3, %c0_4] : memref<1x23xf32, #tpu.memory_space<vmem>>, vector<1x23xf32>
    %4 = vector.broadcast %3 : vector<1x23xf32> to vector<8x23xf32>
    %5 = arith.addf %2, %4 : vector<8x23xf32>
    %c0_5 = arith.constant 0 : index
    %c0_6 = arith.constant 0 : index
    %6 = vector.load %arg3[%c0_5, %c0_6] : memref<8x23xf32, #tpu.memory_space<vmem>>, vector<8x23xf32>
    tpu.vector_store %arg3[%c0_5, %c0_6], %5 {strides = array<i32>} : memref<8x23xf32, #tpu.memory_space<vmem>>, vector<8x23xf32>,
    return
  }
}

</mosaic_0001>

<llo_original>
// kernel: _linear_pallas.1
$region0: #{_linear_pallas.1}
  #allocation0 [shape = 'u32[]', space=smem, size = 0x4, offset = 0x4, fixed_abs, tag = 'smem constant byte address 0x4 - core index']
  #allocation1 [shape = 'u32[144,128]{1,0:T(1,128)}', space=vmem, size = 0x12000, scoped, tag = 'internal scratch']
  %s0 = inlined_call_operand.hbm [shape: f32[8,23], index: 0, kind: input, shape index: {}]
  %s1 = inlined_call_operand.hbm [shape: f32[23,23], index: 1, kind: input, shape index: {}]
  %s2 = inlined_call_operand.vmem [shape: f32[1,23], index: 2, kind: input, shape index: {}]
  %s3 = inlined_call_operand.hbm [shape: f32[8,23], index: 3, kind: output, shape index: {}]
  %s4 = sld [smem:[#allocation0]]
  $region30: #{_linear_pallas.1} parent=0
    _
  %s6 = ssub.s32 1, %s4
  %s7 = scalar_select 0, %s6, %s4
  $region1: #{_linear_pallas.1} parent=0
    #allocation2 [shape = 'u8[4096]{0}', space=vmem, size = 0x1000, scoped, tag = 'input window, operand 0, single buffered']
    #allocation3 [shape = 's32[1]{0}', space=sflag, size = 0x4, scoped, tag = 'scoped memory for _linear_pallas.1']
    #allocation4 [shape = 's32[1]{0}', space=sflag, size = 0x4, scoped, tag = 'scoped memory for _linear_pallas.1']
    #allocation5 [shape = 'u8[12288]{0}', space=vmem, size = 0x3000, scoped, tag = 'input window, operand 1, single buffered']
    #allocation6 [shape = 's32[1]{0}', space=sflag, size = 0x4, scoped, tag = 'scoped memory for _linear_pallas.1']
    #allocation7 [shape = 'u8[4096]{0}', space=vmem, size = 0x1000, scoped, tag = 'output window, operand 0, single buffered']
    %8 = vsyncpa [#allocation3], 0
    %9 = vsyncpa [#allocation6], 0
    %10 = vsyncpa [#allocation4], 0
    // Predicated region
    $region2: #{_linear_pallas.1} parent=1 // pred_check
      _
    $region3: #{_linear_pallas.1} parent=1 // pred_check_branch
      %12 = sbr.rel (0) target = $region5
    $region4: #{_linear_pallas.1} parent=1 // pred_region
      %s14 = ssub.s32 128, 128
      %15 = vsyncadd [#allocation3], %s14
      %s17 = sshll.u32 [#allocation2], 4
      %s18 = int_to_ptr.vmem [resolvable:$true] %s17
      %20 = dma.hbm_to_vmem [thread:$0]  %s0, 128, %s18, [#allocation3]
    $region5: #{_linear_pallas.1} parent=1 // pred_fallthru
      _
    // Predicated region
    $region6: #{_linear_pallas.1} parent=1 // pred_check
      _
    $region7: #{_linear_pallas.1} parent=1 // pred_check_branch
      %22 = sbr.rel (0) target = $region9
    $region8: #{_linear_pallas.1} parent=1 // pred_region
      %s24 = ssub.s32 384, 384
      %25 = vsyncadd [#allocation6], %s24
      %s26 = sshll.u32 [#allocation5], 4
      %s27 = int_to_ptr.vmem [resolvable:$true] %s26
      %32 = dma.hbm_to_vmem [thread:$0]  %s1, 384, %s27, [#allocation6], 128, 128, 8
    $region9: #{_linear_pallas.1} parent=1 // pred_fallthru
      _
    // Predicated region
    $region10: #{_linear_pallas.1} parent=1 // pred_check
      _
    $region11: #{_linear_pallas.1} parent=1 // pred_check_branch
      %34 = sbr.rel (0) target = $region13
    $region12: #{_linear_pallas.1} parent=1 // pred_region
      _
    $region13: #{_linear_pallas.1} parent=1 // pred_fallthru
      _
    // Predicated region
    $region14: #{_linear_pallas.1} parent=1 // pred_check
      _
    $region15: #{_linear_pallas.1} parent=1 // pred_check_branch
      %36 = sbr.rel (0) target = $region17
    $region16: #{_linear_pallas.1} parent=1 // pred_region
      %37 = dma.done [#allocation3], 128
    $region17: #{_linear_pallas.1} parent=1 // pred_fallthru
      _
    // Predicated region
    $region18: #{_linear_pallas.1} parent=1 // pred_check
      _
    $region19: #{_linear_pallas.1} parent=1 // pred_check_branch
      %39 = sbr.rel (0) target = $region21
    $region20: #{_linear_pallas.1} parent=1 // pred_region
      %40 = dma.done [#allocation6], 384
    $region21: #{_linear_pallas.1} parent=1 // pred_fallthru
      _
    %v41 = vld [vmem:[#allocation2] sm:$0xff]
    %v42 = vld [vmem:[#allocation5] sm:$0xff]
    %v43 = vld [vmem:[#allocation5 + $0x8] sm:$0xff]
    %v44 = vld [vmem:[#allocation5 + $0x10] sm:$0x7f]
    %v45 = vld [vmem:[%s2] sm:$0x1]
    %v47 = vlaneseq
    %v48 = vshrl.u32 %v47, 7
    %v49 = vsub.s32 0, %v48
    %v50 = vrot.slane %v45, %v49
    %vm52 = vcmask 187392
    %v54 = vsel %vm52, %v41, 0
    %vm56 = vcmask 1046528
    %v58 = vsel %vm56, %v44, 0
    %60 = vmatprep.subr.mxu0 0.0
    %61 = vmatpush1.msra.mxu0 0.0
    %62 = vmatprep.subr.mxu0 0.0
    %63 = vmatpush1.msra.mxu0 0.0
    %64 = vmatprep.subr.mxu0 0.0
    %65 = vmatpush1.msra.mxu0 0.0
    %66 = vmatprep.subr.mxu0 0.0
    %67 = vmatpush1.msra.mxu0 0.0
    %68 = vmatprep.subr.mxu0 0.0
    %69 = vmatpush1.msra.mxu0 0.0
    %70 = vmatprep.subr.mxu0 0.0
    %71 = vmatpush1.msra.mxu0 0.0
    %72 = vmatprep.subr.mxu0 0.0
    %73 = vmatpush1.msra.mxu0 0.0
    %74 = vmatprep.subr.mxu0 0.0
    %75 = vmatpush1.msra.mxu0 0.0
    %76 = vmatprep.subr.mxu0 0.0
    %77 = vmatpush1.msra.mxu0 0.0
    %78 = vmatprep.subr.mxu0 0.0
    %79 = vmatpush1.msra.mxu0 0.0
    %80 = vmatprep.subr.mxu0 0.0
    %81 = vmatpush1.msra.mxu0 0.0
    %82 = vmatprep.subr.mxu0 0.0
    %83 = vmatpush1.msra.mxu0 0.0
    %84 = vmatprep.subr.mxu0 0.0
    %85 = vmatpush1.msra.mxu0 0.0
    %86 = vmatprep.subr.mxu0 0.0
    %87 = vmatpush1.msra.mxu0 %v58
    %88 = vmatprep.subr.mxu0 0.0
    %89 = vmatpush1.msra.mxu0 %v43
    %90 = vmatprep.subr.mxu0 0.0
    %91 = vmatpush1.msra.mxu0 %v42
    %92 = vmatprep.subr.mxu0 0.0
    %93 = vmatpush2.msra.mxu0 0.0
    %94 = vmatprep.subr.mxu0 0.0
    %95 = vmatpush2.msra.mxu0 0.0
    %96 = vmatprep.subr.mxu0 0.0
    %97 = vmatpush2.msra.mxu0 0.0
    %98 = vmatprep.subr.mxu0 0.0
    %99 = vmatpush2.msra.mxu0 0.0
    %100 = vmatprep.subr.mxu0 0.0
    %101 = vmatpush2.msra.mxu0 0.0
    %102 = vmatprep.subr.mxu0 0.0
    %103 = vmatpush2.msra.mxu0 0.0
    %104 = vmatprep.subr.mxu0 0.0
    %105 = vmatpush2.msra.mxu0 0.0
    %106 = vmatprep.subr.mxu0 0.0
    %107 = vmatpush2.msra.mxu0 0.0
    %108 = vmatprep.subr.mxu0 0.0
    %109 = vmatpush2.msra.mxu0 0.0
    %110 = vmatprep.subr.mxu0 0.0
    %111 = vmatpush2.msra.mxu0 0.0
    %112 = vmatprep.subr.mxu0 0.0
    %113 = vmatpush2.msra.mxu0 0.0
    %114 = vmatprep.subr.mxu0 0.0
    %115 = vmatpush2.msra.mxu0 0.0
    %116 = vmatprep.subr.mxu0 0.0
    %117 = vmatpush2.msra.mxu0 0.0
    %118 = vmatprep.subr.mxu0 0.0
    %119 = vmatpush2.msra.mxu0 0.0
    %120 = vmatprep.subr.mxu0 0.0
    %121 = vmatpush2.msra.mxu0 0.0
    %122 = vmatprep.subr.mxu0 0.0
    %123 = vmatpush2.msra.mxu0 0.0
    %124 = vmatprep.mubr.f32.mxu0 0.0
    %125 = vmatmul.mubr.f32.gmra.mxu0 %v54
    %v126 = vpop.f32.mrf.mxu0
    %v127 = vadd.f32 %v50, %v126
    %v128 = vpop.f32.mrf.mxu0
    %129 = vdwg.mxu0
    %130 = vst.msk [vmem:[#allocation7] sm:$0xff] %vm52, %v127
    // Predicated region
    $region22: #{_linear_pallas.1} parent=1 // pred_check
      _
    $region23: #{_linear_pallas.1} parent=1 // pred_check_branch
      %132 = sbr.rel (0) target = $region25
    $region24: #{_linear_pallas.1} parent=1 // pred_region
      %s134 = ssub.s32 128, 128
      %135 = vsyncadd [#allocation4], %s134
      %s137 = sshll.u32 [#allocation7], 4
      %s138 = int_to_ptr.vmem [resolvable:$true] %s137
      %140 = dma.vmem_to_hbm [thread:$0]  %s138, 128, %s3, [#allocation4]
    $region25: #{_linear_pallas.1} parent=1 // pred_fallthru
      _
    // Predicated region
    $region26: #{_linear_pallas.1} parent=1 // pred_check
      _
    $region27: #{_linear_pallas.1} parent=1 // pred_check_branch
      %142 = sbr.rel (0) target = $region29
    $region28: #{_linear_pallas.1} parent=1 // pred_region
      %143 = dma.done [#allocation4], 128
    $region29: #{_linear_pallas.1} parent=1 // pred_fallthru
      _
    %144 = vsyncpa [#allocation3], 1
    %145 = vsyncpa [#allocation6], 1
    %146 = vsyncpa [#allocation4], 1

</llo_original>
